<compile_context>
chip_gen: v7x
topology: tpu7x:2x2x1
jax: 0.10.0
libtpu: 0.0.40
codegen_flags: <defaults>
</compile_context>

<pallas_src>
import jax
import jax.numpy as jnp
from jax.experimental import pallas as pl
from jax.experimental.pallas import tpu as pltpu


def _round_up(x, m):
    return ((x + m - 1) // m) * m


def _make_kernel(n_text_tiles, n_img_tiles):
    """Builds the kernel with the static per-modality tile counts baked in."""
    n_s = max(n_text_tiles, n_img_tiles)

    def kernel(
        text_ref,   # [Bt, Ts, D] bf16
        tmask_ref,  # [Bt, Ts, 1] bf16
        img_ref,    # [Bt, Ts, D] bf16
        imask_ref,  # [Bt, Ts, 1] bf16
        time_ref,   # [Bt, 1]     f32
        w1t_ref,    # [D, H]      bf16
        w1i_ref,    # [D, H]      bf16
        b1_ref,     # [1, H]      f32
        vt_ref,     # [1, H]      f32  (= w_time @ W1_time, rank-1 time path)
        w2_ref,     # [H, Cp]     bf16 (class dim padded to 128 multiple)
        b2_ref,     # [1, Cp]     f32  (padded cols hold -1e30)
        out_ref,    # [Bt, Cp]    f32  probas (lane-dense)
        tsum_ref,   # [Bt, D]     f32  scratch
        tcnt_ref,   # [Bt, 1]     f32  scratch
        isum_ref,   # [Bt, D]     f32  scratch
        icnt_ref,   # [Bt, 1]     f32  scratch
    ):
        s = pl.program_id(1)

        # ---- Init accumulators at the start of each sequence sweep. ----
        @pl.when(s == 0)
        def _():
            tsum_ref[...] = jnp.zeros_like(tsum_ref)
            tcnt_ref[...] = jnp.zeros_like(tcnt_ref)
            isum_ref[...] = jnp.zeros_like(isum_ref)
            icnt_ref[...] = jnp.zeros_like(icnt_ref)

        # ---- Masked partial sums (bf16 multiply, f32 accumulation; no full
        # f32 temp of the embedding block). ----
        def accum_text():
            tm = tmask_ref[...]                                     # [Bt,Ts,1]
            tsum_ref[...] += jnp.sum(text_ref[...] * tm, axis=1,
                                     dtype=jnp.float32)             # [Bt, D]
            tcnt_ref[...] += jnp.sum(tm, axis=1, dtype=jnp.float32)  # [Bt, 1]

        def accum_img():
            im = imask_ref[...]
            isum_ref[...] += jnp.sum(img_ref[...] * im, axis=1,
                                     dtype=jnp.float32)
            icnt_ref[...] += jnp.sum(im, axis=1, dtype=jnp.float32)

        if n_text_tiles == n_s:
            accum_text()
        else:
            pl.when(s < n_text_tiles)(accum_text)

        if n_img_tiles == n_s:
            accum_img()
        else:
            pl.when(s < n_img_tiles)(accum_img)

        # ---- Finalize on the last sequence tile. ----
        @pl.when(s == n_s - 1)
        def _():
            # Exact divides (counts are small exact values; exactness matters
            # for parity with the f32 reference).
            pooled_t = tsum_ref[...] / jnp.maximum(tcnt_ref[...], 1.0)
            pooled_i = isum_ref[...] / jnp.maximum(icnt_ref[...], 1.0)

            # First layer: two bf16 MXU matmuls + rank-1 time update + bias.
            z1 = (
                jnp.dot(pooled_t.astype(jnp.bfloat16), w1t_ref[...],
                        preferred_element_type=jnp.float32)
                + jnp.dot(pooled_i.astype(jnp.bfloat16), w1i_ref[...],
                          preferred_element_type=jnp.float32)
                + time_ref[...] * vt_ref[...]
                + b1_ref[...]
            )
            z1 = jnp.maximum(z1, 0.0)                               # ReLU

            # Output layer + softmax over the lane-dense padded class dim.
            logits = (
                jnp.dot(z1.astype(jnp.bfloat16), w2_ref[...],
                        preferred_element_type=jnp.float32)
                + b2_ref[...]
            )                                                       # [Bt, Cp]
            m = jnp.max(logits, axis=-1, keepdims=True)
            e = jnp.exp(logits - m)                                 # pad -> 0
            out_ref[...] = e / jnp.sum(e, axis=-1, keepdims=True)   # exact

    return kernel


def model_adaptor_forward(text_embeddings, text_mask, image_embeddings,
                          image_mask, time, params):
    """Wrapper: mirrors ModelAdaptor.forward(...) -> probas."""
    B, St, D = text_embeddings.shape
    Si = image_embeddings.shape[1]
    H = params["b1"].shape[-1]
    C = params["w2"].shape[1]
    Cp = _round_up(C, 128)                  # lane-dense class dim

    # ---- Per-chip VMEM budget with headroom (v7x 64 MiB -> ~51 MiB budget,
    # v5e/v6e 128 MiB -> ~102 MiB). ----
    vmem_cap = 64 * 1024 * 1024
    try:
        info = pltpu.get_tpu_info()
        vmem_cap = int(getattr(info, "vmem_capacity_bytes", vmem_cap))
    except Exception:
        pass                                # unknown chip / interpret mode
    budget = (vmem_cap * 4) // 5

    # ---- Tile sizes. Sequence tiles bound the per-step footprint at any
    # St/Si; the batch tile is then sized against the VMEM budget. ----
    Ts = min(128, _round_up(max(St, Si), 8))
    # Grid-invariant weights (double-buffered by the default pipeline).
    w_bytes = 2 * ((2 * D * H + H * Cp) * 2 + (2 * H + Cp) * 4)

    def footprint(bt):
        seq = 2 * 2 * bt * Ts * D * 2        # text+image blocks, bf16, 2-deep
        msk = 2 * 2 * bt * Ts * 2            # masks, bf16, 2-deep
        outb = 2 * bt * Cp * 4               # output block
        scr = bt * (2 * D + 2) * 4           # scratch accumulators
        other = 2 * bt * 4                   # time
        return seq + msk + outb + scr + other + w_bytes

    bt_cap = 512
    if B >= 16:                              # >= 2 batch grid steps (v7x 2 TCs)
        bt_cap = min(bt_cap, _round_up(-(-B // 2), 8))
    Bt = max(8, min(bt_cap, _round_up(B, 8)))
    Bt = _round_up(Bt, 8)
    while Bt > 8 and footprint(Bt) > budget:
        Bt -= 8

    B_pad = _round_up(B, Bt)
    St_p = _round_up(St, Ts)
    Si_p = _round_up(Si, Ts)
    n_t_tiles = St_p // Ts
    n_i_tiles = Si_p // Ts
    n_s = max(n_t_tiles, n_i_tiles)

    def pad_to(x, shape):
        pads = [(0, t - s) for s, t in zip(x.shape, shape)]
        return jnp.pad(x, pads) if any(p[1] for p in pads) else x

    # Sequence embeddings + masks travel over HBM in bf16.
    text = pad_to(text_embeddings.astype(jnp.bfloat16), (B_pad, St_p, D))
    img = pad_to(image_embeddings.astype(jnp.bfloat16), (B_pad, Si_p, D))
    tmask = pad_to(text_mask.astype(jnp.bfloat16).reshape(B, St, 1),
                   (B_pad, St_p, 1))
    imask = pad_to(image_mask.astype(jnp.bfloat16).reshape(B, Si, 1),
                   (B_pad, Si_p, 1))
    time2d = pad_to(time.reshape(B, 1).astype(jnp.float32), (B_pad, 1))

    # Fold the scalar time path into a rank-1 update:
    #   (time * w_time) @ W1_time == time * (w_time @ W1_time).
    vt = jnp.dot(params["w_time"], params["w1_time"]).astype(jnp.float32)
    b1 = params["b1"].astype(jnp.float32)

    # MXU operands in bf16 (f32 accumulation happens in-kernel).
    w1t = params["w1_text"].astype(jnp.bfloat16)
    w1i = params["w1_img"].astype(jnp.bfloat16)
    w2 = params["w2"].astype(jnp.float32)
    b2 = params["b2"].astype(jnp.float32)
    if Cp != C:
        # Padded W2 columns are zero, padded b2 columns are -1e30, so the
        # softmax assigns the padded classes probability exactly 0.
        w2 = jnp.pad(w2, ((0, 0), (0, Cp - C)))
        b2 = jnp.pad(b2, ((0, 0), (0, Cp - C)), constant_values=-1e30)
    w2 = w2.astype(jnp.bfloat16)

    grid = (B_pad // Bt, n_s)

    t_map = lambda i, s: (i, jnp.minimum(s, n_t_tiles - 1), 0)
    i_map = lambda i, s: (i, jnp.minimum(s, n_i_tiles - 1), 0)
    const2 = lambda i, s: (0, 0)             # weights resident across the grid

    in_specs = [
        pl.BlockSpec((Bt, Ts, D), t_map),                 # text
        pl.BlockSpec((Bt, Ts, 1), t_map),                 # text mask
        pl.BlockSpec((Bt, Ts, D), i_map),                 # image
        pl.BlockSpec((Bt, Ts, 1), i_map),                 # image mask
        pl.BlockSpec((Bt, 1), lambda i, s: (i, 0)),       # time
        pl.BlockSpec((D, H), const2),                     # W1_text (bf16)
        pl.BlockSpec((D, H), const2),                     # W1_img  (bf16)
        pl.BlockSpec((1, H), const2),                     # b1
        pl.BlockSpec((1, H), const2),                     # v_time
        pl.BlockSpec((H, Cp), const2),                    # W2 (bf16, padded)
        pl.BlockSpec((1, Cp), const2),                    # b2 (padded)
    ]
    out_specs = pl.BlockSpec((Bt, Cp), lambda i, s: (i, 0))

    est = footprint(Bt)
    vmem_limit = int(min(budget, max(est + (4 << 20), 8 << 20)))

    probas_pad = pl.pallas_call(
        _make_kernel(n_t_tiles, n_i_tiles),
        out_shape=jax.ShapeDtypeStruct((B_pad, Cp), jnp.float32),
        grid_spec=pltpu.PrefetchScalarGridSpec(
            num_scalar_prefetch=0,
            grid=grid,
            in_specs=in_specs,
            out_specs=out_specs,
            scratch_shapes=[
                pltpu.VMEM((Bt, D), jnp.float32),   # text masked-sum
                pltpu.VMEM((Bt, 1), jnp.float32),   # text token count
                pltpu.VMEM((Bt, D), jnp.float32),   # image masked-sum
                pltpu.VMEM((Bt, 1), jnp.float32),   # image token count
            ],
        ),
        compiler_params=pltpu.CompilerParams(
            dimension_semantics=("parallel", "arbitrary"),
            vmem_limit_bytes=vmem_limit,
        ),
    )(
        text, tmask, img, imask, time2d,
        w1t, w1i, b1, vt, w2, b2,
    )
    return probas_pad[:B, :C]


def init_params(key, D, H, C):
    """Deterministic synthetic parameters (no checkpoint loading)."""
    ks = jax.random.split(key, 6)
    scale1 = 1.0 / jnp.sqrt(jnp.float32(3 * D))
    scale2 = 1.0 / jnp.sqrt(jnp.float32(H))
    return {
        "w1_text": jax.random.normal(ks[0], (D, H), jnp.float32) * scale1,
        "w1_img":  jax.random.normal(ks[1], (D, H), jnp.float32) * scale1,
        "w1_time": jax.random.normal(ks[2], (D, H), jnp.float32) * scale1,
        "b1":      jnp.zeros((1, H), jnp.float32),
        "w2":      jax.random.normal(ks[3], (H, C), jnp.float32) * scale2,
        "b2":      jnp.zeros((1, C), jnp.float32),
        "w_time":  jax.random.normal(ks[4], (1, D), jnp.float32),
    }


if __name__ == "__main__":
    # Small shapes consistent with the forward signature.
    B, St, Si, D, H, C = 2, 8, 8, 32, 32, 4

    key = jax.random.PRNGKey(0)
    k_text, k_img, k_time, k_params = jax.random.split(key, 4)

    text_embeddings = jax.random.normal(k_text, (B, St, D), jnp.float32)
    image_embeddings = jax.random.normal(k_img, (B, Si, D), jnp.float32)
    # Masks: 1.0 for valid tokens, 0.0 for padding (deterministic pattern).
    text_mask = (jnp.arange(St)[None, :]
                 < jnp.array([[St], [St // 2]])).astype(jnp.float32)
    image_mask = (jnp.arange(Si)[None, :]
                  < jnp.array([[Si // 2], [Si]])).astype(jnp.float32)
    time = jax.random.uniform(k_time, (B,), jnp.float32)

    params = init_params(k_params, D, H, C)

    probas = model_adaptor_forward(
        text_embeddings, text_mask, image_embeddings, image_mask, time, params
    )
    probas = jax.block_until_ready(probas)

    assert probas.shape == (B, C)
    # Softmax normalization uses an exact divide now -> rows sum to 1 within
    # f32 rounding (bf16 is only used for embedding transport / MXU feeds).
    row_sums = jnp.sum(probas, axis=-1)
    assert jnp.allclose(row_sums, 1.0, atol=1e-4), row_sums
    assert bool(jnp.all(probas >= 0.0))
    print("KERNEL_OK")
</pallas_src>

<mosaic_0001>
module attributes {stable_mosaic.version = 11 : i64} {
  func.func @kernel(%arg0: i32, %arg1: i32, %arg2: memref<8x8x32xbf16, #tpu.memory_space<vmem>>, %arg3: memref<8x8x1xbf16, #tpu.memory_space<vmem>>, %arg4: memref<8x8x32xbf16, #tpu.memory_space<vmem>>, %arg5: memref<8x8x1xbf16, #tpu.memory_space<vmem>>, %arg6: memref<8x1xf32, #tpu.memory_space<vmem>>, %arg7: memref<32x32xbf16, #tpu.memory_space<vmem>>, %arg8: memref<32x32xbf16, #tpu.memory_space<vmem>>, %arg9: memref<1x32xf32, #tpu.memory_space<vmem>>, %arg10: memref<1x32xf32, #tpu.memory_space<vmem>>, %arg11: memref<32x128xbf16, #tpu.memory_space<vmem>>, %arg12: memref<1x128xf32, #tpu.memory_space<vmem>>, %arg13: memref<8x128xf32, #tpu.memory_space<vmem>>, %arg14: memref<8x32xf32, #tpu.memory_space<vmem>>, %arg15: memref<8x1xf32, #tpu.memory_space<vmem>>, %arg16: memref<8x32xf32, #tpu.memory_space<vmem>>, %arg17: memref<8x1xf32, #tpu.memory_space<vmem>>) attributes {dimension_semantics = [#tpu.dimension_semantics<parallel>, #tpu.dimension_semantics<arbitrary>], iteration_bounds = array<i64: 1, 1>, scalar_prefetch = 0 : i64, scratch_operands = 4 : i64, tpu.core_type = #tpu.core_type<tc>, window_params = [{transform_indices = @transform_0, window_bounds = array<i64: 8, 8, 32>}, {transform_indices = @transform_1, window_bounds = array<i64: 8, 8, 1>}, {transform_indices = @transform_2, window_bounds = array<i64: 8, 8, 32>}, {transform_indices = @transform_3, window_bounds = array<i64: 8, 8, 1>}, {transform_indices = @transform_4, window_bounds = array<i64: 8, 1>}, {pipeline_mode = #tpu.pipeline_mode<synchronous>, transform_indices = @transform_5, window_bounds = array<i64: 32, 32>}, {pipeline_mode = #tpu.pipeline_mode<synchronous>, transform_indices = @transform_6, window_bounds = array<i64: 32, 32>}, {pipeline_mode = #tpu.pipeline_mode<synchronous>, transform_indices = @transform_7, window_bounds = array<i64: 1, 32>}, {pipeline_mode = #tpu.pipeline_mode<synchronous>, transform_indices = @transform_8, window_bounds = array<i64: 1, 32>}, {pipeline_mode = #tpu.pipeline_mode<synchronous>, transform_indices = @transform_9, window_bounds = array<i64: 32, 128>}, {pipeline_mode = #tpu.pipeline_mode<synchronous>, transform_indices = @transform_10, window_bounds = array<i64: 1, 128>}, {transform_indices = @transform_11, window_bounds = array<i64: 8, 128>}]} {
    %c0_i32 = arith.constant 0 : i32
    %0 = arith.cmpi eq, %arg1, %c0_i32 : i32
    %1 = arith.extui %0 : i1 to i32
    %c0_i32_0 = arith.constant 0 : i32
    %2 = arith.cmpi ne, %1, %c0_i32_0 : i32
    scf.if %2 {
      %cst_33 = arith.constant 0.000000e+00 : f32
      %34 = vector.broadcast %cst_33 : f32 to vector<8x32xf32>
      %c0_34 = arith.constant 0 : index
      %c0_35 = arith.constant 0 : index
      %35 = vector.load %arg14[%c0_34, %c0_35] : memref<8x32xf32, #tpu.memory_space<vmem>>, vector<8x32xf32>
      tpu.vector_store %arg14[%c0_34, %c0_35], %34 {strides = array<i32>} : memref<8x32xf32, #tpu.memory_space<vmem>>, vector<8x32xf32>,
      %cst_36 = arith.constant 0.000000e+00 : f32
      %36 = vector.broadcast %cst_36 : f32 to vector<8x1xf32>
      %c0_37 = arith.constant 0 : index
      %c0_38 = arith.constant 0 : index
      %37 = vector.load %arg15[%c0_37, %c0_38] : memref<8x1xf32, #tpu.memory_space<vmem>>, vector<8x1xf32>
      tpu.vector_store %arg15[%c0_37, %c0_38], %36 {strides = array<i32>} : memref<8x1xf32, #tpu.memory_space<vmem>>, vector<8x1xf32>,
      %cst_39 = arith.constant 0.000000e+00 : f32
      %38 = vector.broadcast %cst_39 : f32 to vector<8x32xf32>
      %c0_40 = arith.constant 0 : index
      %c0_41 = arith.constant 0 : index
      %39 = vector.load %arg16[%c0_40, %c0_41] : memref<8x32xf32, #tpu.memory_space<vmem>>, vector<8x32xf32>
      tpu.vector_store %arg16[%c0_40, %c0_41], %38 {strides = array<i32>} : memref<8x32xf32, #tpu.memory_space<vmem>>, vector<8x32xf32>,
      %cst_42 = arith.constant 0.000000e+00 : f32
      %40 = vector.broadcast %cst_42 : f32 to vector<8x1xf32>
      %c0_43 = arith.constant 0 : index
      %c0_44 = arith.constant 0 : index
      %41 = vector.load %arg17[%c0_43, %c0_44] : memref<8x1xf32, #tpu.memory_space<vmem>>, vector<8x1xf32>
      tpu.vector_store %arg17[%c0_43, %c0_44], %40 {strides = array<i32>} : memref<8x1xf32, #tpu.memory_space<vmem>>, vector<8x1xf32>,
    } else {
    }
    %c0 = arith.constant 0 : index
    %c0_1 = arith.constant 0 : index
    %c0_2 = arith.constant 0 : index
    %3 = vector.load %arg3[%c0, %c0_1, %c0_2] : memref<8x8x1xbf16, #tpu.memory_space<vmem>>, vector<8x8x1xbf16>
    %c0_3 = arith.constant 0 : index
    %c0_4 = arith.constant 0 : index
    %4 = vector.load %arg14[%c0_3, %c0_4] : memref<8x32xf32, #tpu.memory_space<vmem>>, vector<8x32xf32>
    %c0_5 = arith.constant 0 : index
    %c0_6 = arith.constant 0 : index
    %c0_7 = arith.constant 0 : index
    %5 = vector.load %arg2[%c0_5, %c0_6, %c0_7] : memref<8x8x32xbf16, #tpu.memory_space<vmem>>, vector<8x8x32xbf16>
    %6 = vector.broadcast %3 : vector<8x8x1xbf16> to vector<8x8x32xbf16>
    %7 = arith.mulf %5, %6 : vector<8x8x32xbf16>
    %8 = arith.extf %7 : vector<8x8x32xbf16> to vector<8x8x32xf32>
    %cst = arith.constant dense<0.000000e+00> : vector<8x32xf32>
    %9 = vector.multi_reduction <add>, %8, %cst [1] : vector<8x8x32xf32> to vector<8x32xf32>
    %10 = arith.addf %4, %9 : vector<8x32xf32>
    %c0_8 = arith.constant 0 : index
    %c0_9 = arith.constant 0 : index
    %11 = vector.load %arg14[%c0_8, %c0_9] : memref<8x32xf32, #tpu.memory_space<vmem>>, vector<8x32xf32>
    tpu.vector_store %arg14[%c0_8, %c0_9], %10 {strides = array<i32>} : memref<8x32xf32, #tpu.memory_space<vmem>>, vector<8x32xf32>,
    %c0_10 = arith.constant 0 : index
    %c0_11 = arith.constant 0 : index
    %12 = vector.load %arg15[%c0_10, %c0_11] : memref<8x1xf32, #tpu.memory_space<vmem>>, vector<8x1xf32>
    %13 = arith.extf %3 : vector<8x8x1xbf16> to vector<8x8x1xf32>
    %cst_12 = arith.constant dense<0.000000e+00> : vector<8x1xf32>
    %14 = vector.multi_reduction <add>, %13, %cst_12 [1] : vector<8x8x1xf32> to vector<8x1xf32>
    %15 = arith.addf %12, %14 : vector<8x1xf32>
    %c0_13 = arith.constant 0 : index
    %c0_14 = arith.constant 0 : index
    %16 = vector.load %arg15[%c0_13, %c0_14] : memref<8x1xf32, #tpu.memory_space<vmem>>, vector<8x1xf32>
    tpu.vector_store %arg15[%c0_13, %c0_14], %15 {strides = array<i32>} : memref<8x1xf32, #tpu.memory_space<vmem>>, vector<8x1xf32>,
    %c0_15 = arith.constant 0 : index
    %c0_16 = arith.constant 0 : index
    %c0_17 = arith.constant 0 : index
    %17 = vector.load %arg5[%c0_15, %c0_16, %c0_17] : memref<8x8x1xbf16, #tpu.memory_space<vmem>>, vector<8x8x1xbf16>
    %c0_18 = arith.constant 0 : index
    %c0_19 = arith.constant 0 : index
    %18 = vector.load %arg16[%c0_18, %c0_19] : memref<8x32xf32, #tpu.memory_space<vmem>>, vector<8x32xf32>
    %c0_20 = arith.constant 0 : index
    %c0_21 = arith.constant 0 : index
    %c0_22 = arith.constant 0 : index
    %19 = vector.load %arg4[%c0_20, %c0_21, %c0_22] : memref<8x8x32xbf16, #tpu.memory_space<vmem>>, vector<8x8x32xbf16>
    %20 = vector.broadcast %17 : vector<8x8x1xbf16> to vector<8x8x32xbf16>
    %21 = arith.mulf %19, %20 : vector<8x8x32xbf16>
    %22 = arith.extf %21 : vector<8x8x32xbf16> to vector<8x8x32xf32>
    %cst_23 = arith.constant dense<0.000000e+00> : vector<8x32xf32>
    %23 = vector.multi_reduction <add>, %22, %cst_23 [1] : vector<8x8x32xf32> to vector<8x32xf32>
    %24 = arith.addf %18, %23 : vector<8x32xf32>
    %c0_24 = arith.constant 0 : index
    %c0_25 = arith.constant 0 : index
    %25 = vector.load %arg16[%c0_24, %c0_25] : memref<8x32xf32, #tpu.memory_space<vmem>>, vector<8x32xf32>
    tpu.vector_store %arg16[%c0_24, %c0_25], %24 {strides = array<i32>} : memref<8x32xf32, #tpu.memory_space<vmem>>, vector<8x32xf32>,
    %c0_26 = arith.constant 0 : index
    %c0_27 = arith.constant 0 : index
    %26 = vector.load %arg17[%c0_26, %c0_27] : memref<8x1xf32, #tpu.memory_space<vmem>>, vector<8x1xf32>
    %27 = arith.extf %17 : vector<8x8x1xbf16> to vector<8x8x1xf32>
    %cst_28 = arith.constant dense<0.000000e+00> : vector<8x1xf32>
    %28 = vector.multi_reduction <add>, %27, %cst_28 [1] : vector<8x8x1xf32> to vector<8x1xf32>
    %29 = arith.addf %26, %28 : vector<8x1xf32>
    %c0_29 = arith.constant 0 : index
    %c0_30 = arith.constant 0 : index
    %30 = vector.load %arg17[%c0_29, %c0_30] : memref<8x1xf32, #tpu.memory_space<vmem>>, vector<8x1xf32>
    tpu.vector_store %arg17[%c0_29, %c0_30], %29 {strides = array<i32>} : memref<8x1xf32, #tpu.memory_space<vmem>>, vector<8x1xf32>,
    %c0_i32_31 = arith.constant 0 : i32
    %31 = arith.cmpi eq, %arg1, %c0_i32_31 : i32
    %32 = arith.extui %31 : i1 to i32
    %c0_i32_32 = arith.constant 0 : i32
    %33 = arith.cmpi ne, %32, %c0_i32_32 : i32
    scf.if %33 {
      %c0_33 = arith.constant 0 : index
      %c0_34 = arith.constant 0 : index
      %34 = vector.load %arg14[%c0_33, %c0_34] : memref<8x32xf32, #tpu.memory_space<vmem>>, vector<8x32xf32>
      %c0_35 = arith.constant 0 : index
      %c0_36 = arith.constant 0 : index
      %35 = vector.load %arg15[%c0_35, %c0_36] : memref<8x1xf32, #tpu.memory_space<vmem>>, vector<8x1xf32>
      %cst_37 = arith.constant 1.000000e+00 : f32
      %36 = vector.broadcast %cst_37 : f32 to vector<8x1xf32>
      %37 = arith.maximumf %35, %36 : vector<8x1xf32>
      %38 = vector.broadcast %37 : vector<8x1xf32> to vector<8x32xf32>
      %39 = arith.divf %34, %38 : vector<8x32xf32>
      %c0_38 = arith.constant 0 : index
      %c0_39 = arith.constant 0 : index
      %40 = vector.load %arg16[%c0_38, %c0_39] : memref<8x32xf32, #tpu.memory_space<vmem>>, vector<8x32xf32>
      %c0_40 = arith.constant 0 : index
      %c0_41 = arith.constant 0 : index
      %41 = vector.load %arg17[%c0_40, %c0_41] : memref<8x1xf32, #tpu.memory_space<vmem>>, vector<8x1xf32>
      %cst_42 = arith.constant 1.000000e+00 : f32
      %42 = vector.broadcast %cst_42 : f32 to vector<8x1xf32>
      %43 = arith.maximumf %41, %42 : vector<8x1xf32>
      %44 = vector.broadcast %43 : vector<8x1xf32> to vector<8x32xf32>
      %45 = arith.divf %40, %44 : vector<8x32xf32>
      %46 = arith.truncf %39 : vector<8x32xf32> to vector<8x32xbf16>
      %c0_43 = arith.constant 0 : index
      %c0_44 = arith.constant 0 : index
      %47 = vector.load %arg7[%c0_43, %c0_44] : memref<32x32xbf16, #tpu.memory_space<vmem>>, vector<32x32xbf16>
      %cst_45 = arith.constant dense<0.000000e+00> : vector<8x32xf32>
      %48 = tpu.matmul %46, %47, %cst_45 {dimension_numbers = #tpu.dot_dimension_numbers<[1], [0], [0], [1], [0, 0, 1, 1], [], []>} : vector<8x32xbf16>, vector<32x32xbf16>, vector<8x32xf32> -> vector<8x32xf32>
      %49 = arith.truncf %45 : vector<8x32xf32> to vector<8x32xbf16>
      %c0_46 = arith.constant 0 : index
      %c0_47 = arith.constant 0 : index
      %50 = vector.load %arg8[%c0_46, %c0_47] : memref<32x32xbf16, #tpu.memory_space<vmem>>, vector<32x32xbf16>
      %cst_48 = arith.constant dense<0.000000e+00> : vector<8x32xf32>
      %51 = tpu.matmul %49, %50, %cst_48 {dimension_numbers = #tpu.dot_dimension_numbers<[1], [0], [0], [1], [0, 0, 1, 1], [], []>} : vector<8x32xbf16>, vector<32x32xbf16>, vector<8x32xf32> -> vector<8x32xf32>
      %52 = arith.addf %48, %51 : vector<8x32xf32>
      %c0_49 = arith.constant 0 : index
      %c0_50 = arith.constant 0 : index
      %53 = vector.load %arg6[%c0_49, %c0_50] : memref<8x1xf32, #tpu.memory_space<vmem>>, vector<8x1xf32>
      %c0_51 = arith.constant 0 : index
      %c0_52 = arith.constant 0 : index
      %54 = vector.load %arg10[%c0_51, %c0_52] : memref<1x32xf32, #tpu.memory_space<vmem>>, vector<1x32xf32>
      %55 = vector.broadcast %53 : vector<8x1xf32> to vector<8x32xf32>
      %56 = vector.broadcast %54 : vector<1x32xf32> to vector<8x32xf32>
      %57 = arith.mulf %55, %56 : vector<8x32xf32>
      %58 = arith.addf %52, %57 : vector<8x32xf32>
      %c0_53 = arith.constant 0 : index
      %c0_54 = arith.constant 0 : index
      %59 = vector.load %arg9[%c0_53, %c0_54] : memref<1x32xf32, #tpu.memory_space<vmem>>, vector<1x32xf32>
      %60 = vector.broadcast %59 : vector<1x32xf32> to vector<8x32xf32>
      %61 = arith.addf %58, %60 : vector<8x32xf32>
      %cst_55 = arith.constant 0.000000e+00 : f32
      %62 = vector.broadcast %cst_55 : f32 to vector<8x32xf32>
      %63 = arith.maximumf %61, %62 : vector<8x32xf32>
      %64 = arith.truncf %63 : vector<8x32xf32> to vector<8x32xbf16>
      %c0_56 = arith.constant 0 : index
      %c0_57 = arith.constant 0 : index
      %65 = vector.load %arg11[%c0_56, %c0_57] : memref<32x128xbf16, #tpu.memory_space<vmem>>, vector<32x128xbf16>
      %cst_58 = arith.constant dense<0.000000e+00> : vector<8x128xf32>
      %66 = tpu.matmul %64, %65, %cst_58 {dimension_numbers = #tpu.dot_dimension_numbers<[1], [0], [0], [1], [0, 0, 1, 1], [], []>} : vector<8x32xbf16>, vector<32x128xbf16>, vector<8x128xf32> -> vector<8x128xf32>
      %c0_59 = arith.constant 0 : index
      %c0_60 = arith.constant 0 : index
      %67 = vector.load %arg12[%c0_59, %c0_60] : memref<1x128xf32, #tpu.memory_space<vmem>>, vector<1x128xf32>
      %68 = vector.broadcast %67 : vector<1x128xf32> to vector<8x128xf32>
      %69 = arith.addf %66, %68 : vector<8x128xf32>
      %cst_61 = arith.constant dense<0xFF800000> : vector<8xf32>
      %70 = vector.multi_reduction <maximumf>, %69, %cst_61 [1] : vector<8x128xf32> to vector<8xf32>
      %71 = vector.shape_cast %70 : vector<8xf32> to vector<8x1xf32>
      %72 = vector.broadcast %71 : vector<8x1xf32> to vector<8x128xf32>
      %73 = arith.subf %69, %72 : vector<8x128xf32>
      %74 = math.exp %73 : vector<8x128xf32>
      %cst_62 = arith.constant dense<0.000000e+00> : vector<8xf32>
      %75 = vector.multi_reduction <add>, %74, %cst_62 [1] : vector<8x128xf32> to vector<8xf32>
      %76 = vector.shape_cast %75 : vector<8xf32> to vector<8x1xf32>
      %77 = vector.broadcast %76 : vector<8x1xf32> to vector<8x128xf32>
      %78 = arith.divf %74, %77 : vector<8x128xf32>
      %c0_63 = arith.constant 0 : index
      %c0_64 = arith.constant 0 : index
      %79 = vector.load %arg13[%c0_63, %c0_64] : memref<8x128xf32, #tpu.memory_space<vmem>>, vector<8x128xf32>
      tpu.vector_store %arg13[%c0_63, %c0_64], %78 {strides = array<i32>} : memref<8x128xf32, #tpu.memory_space<vmem>>, vector<8x128xf32>,
    } else {
    }
    return
  }
  func.func @transform_0(%arg0: i32, %arg1: i32) -> (i32, i32, i32) {
    %c0_i32 = arith.constant 0 : i32
    %0 = arith.minsi %arg1, %c0_i32 : i32
    %c0_i32_0 = arith.constant 0 : i32
    %c0_i32_1 = arith.constant 0 : i32
    return %arg0, %0, %c0_i32_0 : i32, i32, i32
  }
  func.func @transform_1(%arg0: i32, %arg1: i32) -> (i32, i32, i32) {
    %c0_i32 = arith.constant 0 : i32
    %0 = arith.minsi %arg1, %c0_i32 : i32
    %c0_i32_0 = arith.constant 0 : i32
    %c0_i32_1 = arith.constant 0 : i32
    return %arg0, %0, %c0_i32_0 : i32, i32, i32
  }
  func.func @transform_2(%arg0: i32, %arg1: i32) -> (i32, i32, i32) {
    %c0_i32 = arith.constant 0 : i32
    %0 = arith.minsi %arg1, %c0_i32 : i32
    %c0_i32_0 = arith.constant 0 : i32
    %c0_i32_1 = arith.constant 0 : i32
    return %arg0, %0, %c0_i32_0 : i32, i32, i32
  }
  func.func @transform_3(%arg0: i32, %arg1: i32) -> (i32, i32, i32) {
    %c0_i32 = arith.constant 0 : i32
    %0 = arith.minsi %arg1, %c0_i32 : i32
    %c0_i32_0 = arith.constant 0 : i32
    %c0_i32_1 = arith.constant 0 : i32
    return %arg0, %0, %c0_i32_0 : i32, i32, i32
  }
  func.func @transform_4(%arg0: i32, %arg1: i32) -> (i32, i32) {
    %c0_i32 = arith.constant 0 : i32
    %c0_i32_0 = arith.constant 0 : i32
    return %arg0, %c0_i32 : i32, i32
  }
  func.func @transform_5(%arg0: i32, %arg1: i32) -> (i32, i32) {
    %c0_i32 = arith.constant 0 : i32
    %c0_i32_0 = arith.constant 0 : i32
    %c0_i32_1 = arith.constant 0 : i32
    return %c0_i32, %c0_i32_0 : i32, i32
  }
  func.func @transform_6(%arg0: i32, %arg1: i32) -> (i32, i32) {
    %c0_i32 = arith.constant 0 : i32
    %c0_i32_0 = arith.constant 0 : i32
    %c0_i32_1 = arith.constant 0 : i32
    return %c0_i32, %c0_i32_0 : i32, i32
  }
  func.func @transform_7(%arg0: i32, %arg1: i32) -> (i32, i32) {
    %c0_i32 = arith.constant 0 : i32
    %c0_i32_0 = arith.constant 0 : i32
    %c0_i32_1 = arith.constant 0 : i32
    return %c0_i32, %c0_i32_0 : i32, i32
  }
  func.func @transform_8(%arg0: i32, %arg1: i32) -> (i32, i32) {
    %c0_i32 = arith.constant 0 : i32
    %c0_i32_0 = arith.constant 0 : i32
    %c0_i32_1 = arith.constant 0 : i32
    return %c0_i32, %c0_i32_0 : i32, i32
  }
  func.func @transform_9(%arg0: i32, %arg1: i32) -> (i32, i32) {
    %c0_i32 = arith.constant 0 : i32
    %c0_i32_0 = arith.constant 0 : i32
    %c0_i32_1 = arith.constant 0 : i32
    return %c0_i32, %c0_i32_0 : i32, i32
  }
  func.func @transform_10(%arg0: i32, %arg1: i32) -> (i32, i32) {
    %c0_i32 = arith.constant 0 : i32
    %c0_i32_0 = arith.constant 0 : i32
    %c0_i32_1 = arith.constant 0 : i32
    return %c0_i32, %c0_i32_0 : i32, i32
  }
  func.func @transform_11(%arg0: i32, %arg1: i32) -> (i32, i32) {
    %c0_i32 = arith.constant 0 : i32
    %c0_i32_0 = arith.constant 0 : i32
    return %arg0, %c0_i32 : i32, i32
  }
}

</mosaic_0001>

<llo_original>
// kernel: tpu_custom_call.1
$region0: #{tpu_custom_call.1}
  #allocation0 [shape = 'u32[]', space=smem, size = 0x4, offset = 0x4, fixed_abs, tag = 'smem constant byte address 0x4 - core index']
  #allocation1 [shape = 'u32[144,128]{1,0:T(1,128)}', space=vmem, size = 0x12000, scoped, tag = 'internal scratch']
  #allocation2 [shape = 'f32[8,32]{1,0:T(8,128)}', space=vmem, size = 0x1000, scoped, tag = 'scratch operand']
  #allocation3 [shape = 'f32[8,1]{1,0:T(8,128)}', space=vmem, size = 0x1000, scoped, tag = 'scratch operand']
  #allocation4 [shape = 'f32[8,32]{1,0:T(8,128)}', space=vmem, size = 0x1000, scoped, tag = 'scratch operand']
  #allocation5 [shape = 'f32[8,1]{1,0:T(8,128)}', space=vmem, size = 0x1000, scoped, tag = 'scratch operand']
  %s0 = inlined_call_operand.vmem [shape: bf16[8,8,32], index: 0, kind: input, shape index: {}]
  %s1 = inlined_call_operand.vmem [shape: bf16[8,8,1], index: 1, kind: input, shape index: {}]
  %s2 = inlined_call_operand.vmem [shape: bf16[8,8,32], index: 2, kind: input, shape index: {}]
  %s3 = inlined_call_operand.vmem [shape: bf16[8,8,1], index: 3, kind: input, shape index: {}]
  %s4 = inlined_call_operand.vmem [shape: f32[8,1], index: 4, kind: input, shape index: {}]
  %s5 = inlined_call_operand.vmem [shape: bf16[32,32], index: 5, kind: input, shape index: {}]
  %s6 = inlined_call_operand.vmem [shape: bf16[32,32], index: 6, kind: input, shape index: {}]
  %s7 = inlined_call_operand.vmem [shape: f32[1,32], index: 7, kind: input, shape index: {}]
  %s8 = inlined_call_operand.vmem [shape: f32[1,32], index: 8, kind: input, shape index: {}]
  %s9 = inlined_call_operand.vmem [shape: bf16[32,128], index: 9, kind: input, shape index: {}]
  %s10 = inlined_call_operand.vmem [shape: f32[1,128], index: 10, kind: input, shape index: {}]
  %s11 = inlined_call_operand.hbm [shape: f32[8,128], index: 11, kind: output, shape index: {}]
  %s12 = sld [smem:[#allocation0]]
  $region62: #{tpu_custom_call.1} parent=0
    _
  %s14 = ssub.s32 1, %s12
  %s15 = scalar_select 0, %s14, %s12
  $region1: #{tpu_custom_call.1} parent=0
    #allocation6 [shape = 'u8[4096]{0}', space=vmem, size = 0x1000, scoped, tag = 'output window, operand 0, single buffered']
    #allocation7 [shape = 's32[1]{0}', space=sflag, size = 0x4, scoped, tag = 'scoped memory for tpu_custom_call.1']
    %16 = vsyncpa [#allocation7], 0
    // Predicated region
    $region2: #{tpu_custom_call.1} parent=1 // pred_check
      _
    $region3: #{tpu_custom_call.1} parent=1 // pred_check_branch
      %18 = sbr.rel (0) target = $region5
    $region4: #{tpu_custom_call.1} parent=1 // pred_region
      _
    $region5: #{tpu_custom_call.1} parent=1 // pred_fallthru
      _
    // Predicated region
    $region6: #{tpu_custom_call.1} parent=1 // pred_check
      _
    $region7: #{tpu_custom_call.1} parent=1 // pred_check_branch
      %20 = sbr.rel (0) target = $region9
    $region8: #{tpu_custom_call.1} parent=1 // pred_region
      _
    $region9: #{tpu_custom_call.1} parent=1 // pred_fallthru
      _
    // Predicated region
    $region10: #{tpu_custom_call.1} parent=1 // pred_check
      _
    $region11: #{tpu_custom_call.1} parent=1 // pred_check_branch
      %22 = sbr.rel (0) target = $region13
    $region12: #{tpu_custom_call.1} parent=1 // pred_region
      _
    $region13: #{tpu_custom_call.1} parent=1 // pred_fallthru
      _
    // Predicated region
    $region14: #{tpu_custom_call.1} parent=1 // pred_check
      _
    $region15: #{tpu_custom_call.1} parent=1 // pred_check_branch
      %24 = sbr.rel (0) target = $region17
    $region16: #{tpu_custom_call.1} parent=1 // pred_region
      _
    $region17: #{tpu_custom_call.1} parent=1 // pred_fallthru
      _
    // Predicated region
    $region18: #{tpu_custom_call.1} parent=1 // pred_check
      _
    $region19: #{tpu_custom_call.1} parent=1 // pred_check_branch
      %26 = sbr.rel (0) target = $region21
    $region20: #{tpu_custom_call.1} parent=1 // pred_region
      _
    $region21: #{tpu_custom_call.1} parent=1 // pred_fallthru
      _
    // Predicated region
    $region22: #{tpu_custom_call.1} parent=1 // pred_check
      _
    $region23: #{tpu_custom_call.1} parent=1 // pred_check_branch
      %28 = sbr.rel (0) target = $region25
    $region24: #{tpu_custom_call.1} parent=1 // pred_region
      _
    $region25: #{tpu_custom_call.1} parent=1 // pred_fallthru
      _
    // Predicated region
    $region26: #{tpu_custom_call.1} parent=1 // pred_check
      _
    $region27: #{tpu_custom_call.1} parent=1 // pred_check_branch
      %30 = sbr.rel (0) target = $region29
    $region28: #{tpu_custom_call.1} parent=1 // pred_region
      _
    $region29: #{tpu_custom_call.1} parent=1 // pred_fallthru
      _
    // Predicated region
    $region30: #{tpu_custom_call.1} parent=1 // pred_check
      _
    $region31: #{tpu_custom_call.1} parent=1 // pred_check_branch
      %32 = sbr.rel (0) target = $region33
    $region32: #{tpu_custom_call.1} parent=1 // pred_region
      _
    $region33: #{tpu_custom_call.1} parent=1 // pred_fallthru
      _
    // Predicated region
    $region34: #{tpu_custom_call.1} parent=1 // pred_check
      _
    $region35: #{tpu_custom_call.1} parent=1 // pred_check_branch
      %34 = sbr.rel (0) target = $region37
    $region36: #{tpu_custom_call.1} parent=1 // pred_region
      _
    $region37: #{tpu_custom_call.1} parent=1 // pred_fallthru
      _
    // Predicated region
    $region38: #{tpu_custom_call.1} parent=1 // pred_check
      _
    $region39: #{tpu_custom_call.1} parent=1 // pred_check_branch
      %36 = sbr.rel (0) target = $region41
    $region40: #{tpu_custom_call.1} parent=1 // pred_region
      _
    $region41: #{tpu_custom_call.1} parent=1 // pred_fallthru
      _
    // Predicated region
    $region42: #{tpu_custom_call.1} parent=1 // pred_check
      _
    $region43: #{tpu_custom_call.1} parent=1 // pred_check_branch
      %38 = sbr.rel (0) target = $region45
    $region44: #{tpu_custom_call.1} parent=1 // pred_region
      _
    $region45: #{tpu_custom_call.1} parent=1 // pred_fallthru
      _
    %p40 = scmp.eq.s32.totalorder 0, 0
    // Predicated region
    $region46: #{tpu_custom_call.1} parent=1 // pred_check
      %p41 = pneg %p40
    $region47: #{tpu_custom_call.1} parent=1 // pred_check_branch
      %43 = sbr.rel (%p41) target = $region49
    $region48: #{tpu_custom_call.1} parent=1 // pred_region
      %vm44 = vcmask 261120
      %45 = vst.msk [vmem:[#allocation2] sm:$0xff] %vm44, 0.0
      %vm46 = vcmask 7168
      %47 = vst.msk [vmem:[#allocation3] sm:$0xff] %vm46, 0.0
      %48 = vst.msk [vmem:[#allocation4] sm:$0xff] %vm44, 0.0
      %49 = vst.msk [vmem:[#allocation5] sm:$0xff] %vm46, 0.0
    $region49: #{tpu_custom_call.1} parent=1 // pred_fallthru
      _
    %v50 = vld [vmem:[%s1] sm:$0xf]
    %v51 = vld [vmem:[%s1 + $0x4] sm:$0xf]
    %v52 = vld [vmem:[%s1 + $0x8] sm:$0xf]
    %v53 = vld [vmem:[%s1 + $0xc] sm:$0xf]
    %v54 = vld [vmem:[%s1 + $0x10] sm:$0xf]
    %v55 = vld [vmem:[%s1 + $0x14] sm:$0xf]
    %v56 = vld [vmem:[%s1 + $0x18] sm:$0xf]
    %v57 = vld [vmem:[%s1 + $0x1c] sm:$0xf]
    %v58 = vld [vmem:[#allocation2] sm:$0xff]
    %v59 = vld [vmem:[%s0] sm:$0xf]
    %v60 = vld [vmem:[%s0 + $0x4] sm:$0xf]
    %v61 = vld [vmem:[%s0 + $0x8] sm:$0xf]
    %v62 = vld [vmem:[%s0 + $0xc] sm:$0xf]
    %v63 = vld [vmem:[%s0 + $0x10] sm:$0xf]
    %v64 = vld [vmem:[%s0 + $0x14] sm:$0xf]
    %v65 = vld [vmem:[%s0 + $0x18] sm:$0xf]
    %v66 = vld [vmem:[%s0 + $0x1c] sm:$0xf]
    %68 = vset.pattern.permute.xlu0 0
    %69 = vperm.xlu0 %68, %v50
    %v70 = vpop.permute.xlu0 %69
    %v73 = vunpack.c.l.s4 839922192
    %v74 = vunpack.c.0.s8 %v73
    %v75 = vlaneseq
    %v76 = vshrl.u32 %v75, 7
    %v77 = vsub.s32 %v74, %v76
    %v78 = vrot.slane %v70, %v77
    %80 = vset.pattern.permute.xlu0 0
    %81 = vperm.xlu0 %80, %v51
    %v82 = vpop.permute.xlu0 %81
    %v85 = vunpack.c.l.s4 839922192
    %v86 = vunpack.c.0.s8 %v85
    %v87 = vlaneseq
    %v88 = vshrl.u32 %v87, 7
    %v89 = vsub.s32 %v86, %v88
    %v90 = vrot.slane %v82, %v89
    %92 = vset.pattern.permute.xlu0 0
    %93 = vperm.xlu0 %92, %v52
    %v94 = vpop.permute.xlu0 %93
    %v97 = vunpack.c.l.s4 839922192
    %v98 = vunpack.c.0.s8 %v97
    %v99 = vlaneseq
    %v100 = vshrl.u32 %v99, 7
    %v101 = vsub.s32 %v98, %v100
    %v102 = vrot.slane %v94, %v101
    %104 = vset.pattern.permute.xlu0 0
    %105 = vperm.xlu0 %104, %v53
    %v106 = vpop.permute.xlu0 %105
    %v109 = vunpack.c.l.s4 839922192
    %v110 = vunpack.c.0.s8 %v109
    %v111 = vlaneseq
    %v112 = vshrl.u32 %v111, 7
    %v113 = vsub.s32 %v110, %v112
    %v114 = vrot.slane %v106, %v113
    %116 = vset.pattern.permute.xlu0 0
    %117 = vperm.xlu0 %116, %v54
    %v118 = vpop.permute.xlu0 %117
    %v121 = vunpack.c.l.s4 839922192
    %v122 = vunpack.c.0.s8 %v121
    %v123 = vlaneseq
    %v124 = vshrl.u32 %v123, 7
    %v125 = vsub.s32 %v122, %v124
    %v126 = vrot.slane %v118, %v125
    %128 = vset.pattern.permute.xlu0 0
    %129 = vperm.xlu0 %128, %v55
    %v130 = vpop.permute.xlu0 %129
    %v133 = vunpack.c.l.s4 839922192
    %v134 = vunpack.c.0.s8 %v133
    %v135 = vlaneseq
    %v136 = vshrl.u32 %v135, 7
    %v137 = vsub.s32 %v134, %v136
    %v138 = vrot.slane %v130, %v137
    %140 = vset.pattern.permute.xlu0 0
    %141 = vperm.xlu0 %140, %v56
    %v142 = vpop.permute.xlu0 %141
    %v145 = vunpack.c.l.s4 839922192
    %v146 = vunpack.c.0.s8 %v145
    %v147 = vlaneseq
    %v148 = vshrl.u32 %v147, 7
    %v149 = vsub.s32 %v146, %v148
    %v150 = vrot.slane %v142, %v149
    %152 = vset.pattern.permute.xlu0 0
    %153 = vperm.xlu0 %152, %v57
    %v154 = vpop.permute.xlu0 %153
    %v157 = vunpack.c.l.s4 839922192
    %v158 = vunpack.c.0.s8 %v157
    %v159 = vlaneseq
    %v160 = vshrl.u32 %v159, 7
    %v161 = vsub.s32 %v158, %v160
    %v162 = vrot.slane %v154, %v161
    %v163 = vmul.bf16 %v59, %v78
    %v164 = vmul.bf16 %v60, %v90
    %v165 = vmul.bf16 %v61, %v102
    %v166 = vmul.bf16 %v62, %v114
    %v167 = vmul.bf16 %v63, %v126
    %v168 = vmul.bf16 %v64, %v138
    %v169 = vmul.bf16 %v65, %v150
    %v170 = vmul.bf16 %v66, %v162
    %v171 = vunpack.c.l.bf16 %v163
    %v172 = vunpack.c.l.bf16 %v164
    %v173 = vunpack.c.l.bf16 %v165
    %v174 = vunpack.c.l.bf16 %v166
    %v175 = vunpack.c.l.bf16 %v167
    %v176 = vunpack.c.l.bf16 %v168
    %v177 = vunpack.c.l.bf16 %v169
    %v178 = vunpack.c.l.bf16 %v170
    %vm179 = vcmask 261120
    %v180 = vsel %vm179, %v171, 0.0
    %v181 = vrot.slane %v180, 4
    %v182 = vadd.f32 %v180, %v181
    %v183 = vrot.slane %v182, 2
    %v184 = vadd.f32 %v182, %v183
    %v185 = vrot.slane %v184, 1
    %v186 = vadd.f32 %v184, %v185
    %v187 = vsel %vm179, %v172, 0.0
    %v188 = vrot.slane %v187, 4
    %v189 = vadd.f32 %v187, %v188
    %v190 = vrot.slane %v189, 2
    %v191 = vadd.f32 %v189, %v190
    %v192 = vrot.slane %v191, 1
    %v193 = vadd.f32 %v191, %v192
    %v194 = vsel %vm179, %v173, 0.0
    %v195 = vrot.slane %v194, 4
    %v196 = vadd.f32 %v194, %v195
    %v197 = vrot.slane %v196, 2
    %v198 = vadd.f32 %v196, %v197
    %v199 = vrot.slane %v198, 1
    %v200 = vadd.f32 %v198, %v199
    %v201 = vsel %vm179, %v174, 0.0
    %v202 = vrot.slane %v201, 4
    %v203 = vadd.f32 %v201, %v202
    %v204 = vrot.slane %v203, 2
    %v205 = vadd.f32 %v203, %v204
    %v206 = vrot.slane %v205, 1
    %v207 = vadd.f32 %v205, %v206
    %v208 = vsel %vm179, %v175, 0.0
    %v209 = vrot.slane %v208, 4
    %v210 = vadd.f32 %v208, %v209
    %v211 = vrot.slane %v210, 2
    %v212 = vadd.f32 %v210, %v211
    %v213 = vrot.slane %v212, 1
    %v214 = vadd.f32 %v212, %v213
    %v215 = vsel %vm179, %v176, 0.0
    %v216 = vrot.slane %v215, 4
    %v217 = vadd.f32 %v215, %v216
    %v218 = vrot.slane %v217, 2
    %v219 = vadd.f32 %v217, %v218
    %v220 = vrot.slane %v219, 1
    %v221 = vadd.f32 %v219, %v220
    %v222 = vsel %vm179, %v177, 0.0
    %v223 = vrot.slane %v222, 4
    %v224 = vadd.f32 %v222, %v223
    %v225 = vrot.slane %v224, 2
    %v226 = vadd.f32 %v224, %v225
    %v227 = vrot.slane %v226, 1
    %v228 = vadd.f32 %v226, %v227
    %v229 = vsel %vm179, %v178, 0.0
    %v230 = vrot.slane %v229, 4
    %v231 = vadd.f32 %v229, %v230
    %v232 = vrot.slane %v231, 2
    %v233 = vadd.f32 %v231, %v232
    %v234 = vrot.slane %v233, 1
    %v235 = vadd.f32 %v233, %v234
    %vm244 = vcmask 1041409
    %v245 = vsel %vm244, %v193, %v186
    %vm246 = vcmask 1042434
    %v247 = vsel %vm246, %v200, %v245
    %vm248 = vcmask 1043459
    %v249 = vsel %vm248, %v207, %v247
    %vm250 = vcmask 1044484
    %v251 = vsel %vm250, %v214, %v249
    %vm252 = vcmask 1045509
    %v253 = vsel %vm252, %v221, %v251
    %vm254 = vcmask 1046534
    %v255 = vsel %vm254, %v228, %v253
    %vm256 = vcmask 1047559
    %v257 = vsel %vm256, %v235, %v255
    %v259 = vadd.f32 %v58, %v257
    %260 = vst.msk [vmem:[#allocation2] sm:$0xff] %vm179, %v259
    %v261 = vld [vmem:[#allocation3] sm:$0xff]
    %v262 = vunpack.c.l.bf16 %v50
    %v263 = vunpack.c.l.bf16 %v51
    %v264 = vunpack.c.l.bf16 %v52
    %v265 = vunpack.c.l.bf16 %v53
    %v266 = vunpack.c.l.bf16 %v54
    %v267 = vunpack.c.l.bf16 %v55
    %v268 = vunpack.c.l.bf16 %v56
    %v269 = vunpack.c.l.bf16 %v57
    %vm270 = vcmask 7168
    %v271 = vsel %vm270, %v262, 0.0
    %v272 = vrot.slane %v271, 4
    %v273 = vadd.f32 %v271, %v272
    %v274 = vrot.slane %v273, 2
    %v275 = vadd.f32 %v273, %v274
    %v276 = vrot.slane %v275, 1
    %v277 = vadd.f32 %v275, %v276
    %v278 = vsel %vm270, %v263, 0.0
    %v279 = vrot.slane %v278, 4
    %v280 = vadd.f32 %v278, %v279
    %v281 = vrot.slane %v280, 2
    %v282 = vadd.f32 %v280, %v281
    %v283 = vrot.slane %v282, 1
    %v284 = vadd.f32 %v282, %v283
    %v285 = vsel %vm270, %v264, 0.0
    %v286 = vrot.slane %v285, 4
    %v287 = vadd.f32 %v285, %v286
    %v288 = vrot.slane %v287, 2
    %v289 = vadd.f32 %v287, %v288
    %v290 = vrot.slane %v289, 1
    %v291 = vadd.f32 %v289, %v290
    %v292 = vsel %vm270, %v265, 0.0
    %v293 = vrot.slane %v292, 4
    %v294 = vadd.f32 %v292, %v293
    %v295 = vrot.slane %v294, 2
    %v296 = vadd.f32 %v294, %v295
    %v297 = vrot.slane %v296, 1
    %v298 = vadd.f32 %v296, %v297
    %v299 = vsel %vm270, %v266, 0.0
    %v300 = vrot.slane %v299, 4
    %v301 = vadd.f32 %v299, %v300
    %v302 = vrot.slane %v301, 2
    %v303 = vadd.f32 %v301, %v302
    %v304 = vrot.slane %v303, 1
    %v305 = vadd.f32 %v303, %v304
    %v306 = vsel %vm270, %v267, 0.0
    %v307 = vrot.slane %v306, 4
    %v308 = vadd.f32 %v306, %v307
    %v309 = vrot.slane %v308, 2
    %v310 = vadd.f32 %v308, %v309
    %v311 = vrot.slane %v310, 1
    %v312 = vadd.f32 %v310, %v311
    %v313 = vsel %vm270, %v268, 0.0
    %v314 = vrot.slane %v313, 4
    %v315 = vadd.f32 %v313, %v314
    %v316 = vrot.slane %v315, 2
    %v317 = vadd.f32 %v315, %v316
    %v318 = vrot.slane %v317, 1
    %v319 = vadd.f32 %v317, %v318
    %v320 = vsel %vm270, %v269, 0.0
    %v321 = vrot.slane %v320, 4
    %v322 = vadd.f32 %v320, %v321
    %v323 = vrot.slane %v322, 2
    %v324 = vadd.f32 %v322, %v323
    %v325 = vrot.slane %v324, 1
    %v326 = vadd.f32 %v324, %v325
    %v335 = vsel %vm244, %v284, %v277
    %v336 = vsel %vm246, %v291, %v335
    %v337 = vsel %vm248, %v298, %v336
    %v338 = vsel %vm250, %v305, %v337
    %v339 = vsel %vm252, %v312, %v338
    %v340 = vsel %vm254, %v319, %v339
    %v341 = vsel %vm256, %v326, %v340
    %v343 = vadd.f32 %v261, %v341
    %344 = vst.msk [vmem:[#allocation3] sm:$0xff] %vm270, %v343
    %v345 = vld [vmem:[%s3] sm:$0xf]
    %v346 = vld [vmem:[%s3 + $0x4] sm:$0xf]
    %v347 = vld [vmem:[%s3 + $0x8] sm:$0xf]
    %v348 = vld [vmem:[%s3 + $0xc] sm:$0xf]
    %v349 = vld [vmem:[%s3 + $0x10] sm:$0xf]
    %v350 = vld [vmem:[%s3 + $0x14] sm:$0xf]
    %v351 = vld [vmem:[%s3 + $0x18] sm:$0xf]
    %v352 = vld [vmem:[%s3 + $0x1c] sm:$0xf]
    %v353 = vld [vmem:[#allocation4] sm:$0xff]
    %v354 = vld [vmem:[%s2] sm:$0xf]
    %v355 = vld [vmem:[%s2 + $0x4] sm:$0xf]
    %v356 = vld [vmem:[%s2 + $0x8] sm:$0xf]
    %v357 = vld [vmem:[%s2 + $0xc] sm:$0xf]
    %v358 = vld [vmem:[%s2 + $0x10] sm:$0xf]
    %v359 = vld [vmem:[%s2 + $0x14] sm:$0xf]
    %v360 = vld [vmem:[%s2 + $0x18] sm:$0xf]
    %v361 = vld [vmem:[%s2 + $0x1c] sm:$0xf]
    %363 = vset.pattern.permute.xlu0 0
    %364 = vperm.xlu0 %363, %v345
    %v365 = vpop.permute.xlu0 %364
    %v368 = vunpack.c.l.s4 839922192
    %v369 = vunpack.c.0.s8 %v368
    %v370 = vlaneseq
    %v371 = vshrl.u32 %v370, 7
    %v372 = vsub.s32 %v369, %v371
    %v373 = vrot.slane %v365, %v372
    %375 = vset.pattern.permute.xlu0 0
    %376 = vperm.xlu0 %375, %v346
    %v377 = vpop.permute.xlu0 %376
    %v380 = vunpack.c.l.s4 839922192
    %v381 = vunpack.c.0.s8 %v380
    %v382 = vlaneseq
    %v383 = vshrl.u32 %v382, 7
    %v384 = vsub.s32 %v381, %v383
    %v385 = vrot.slane %v377, %v384
    %387 = vset.pattern.permute.xlu0 0
    %388 = vperm.xlu0 %387, %v347
    %v389 = vpop.permute.xlu0 %388
    %v392 = vunpack.c.l.s4 839922192
    %v393 = vunpack.c.0.s8 %v392
    %v394 = vlaneseq
    %v395 = vshrl.u32 %v394, 7
    %v396 = vsub.s32 %v393, %v395
    %v397 = vrot.slane %v389, %v396
    %399 = vset.pattern.permute.xlu0 0
    %400 = vperm.xlu0 %399, %v348
    %v401 = vpop.permute.xlu0 %400
    %v404 = vunpack.c.l.s4 839922192
    %v405 = vunpack.c.0.s8 %v404
    %v406 = vlaneseq
    %v407 = vshrl.u32 %v406, 7
    %v408 = vsub.s32 %v405, %v407
    %v409 = vrot.slane %v401, %v408
    %411 = vset.pattern.permute.xlu0 0
    %412 = vperm.xlu0 %411, %v349
    %v413 = vpop.permute.xlu0 %412
    %v416 = vunpack.c.l.s4 839922192
    %v417 = vunpack.c.0.s8 %v416
    %v418 = vlaneseq
    %v419 = vshrl.u32 %v418, 7
    %v420 = vsub.s32 %v417, %v419
    %v421 = vrot.slane %v413, %v420
    %423 = vset.pattern.permute.xlu0 0
    %424 = vperm.xlu0 %423, %v350
    %v425 = vpop.permute.xlu0 %424
    %v428 = vunpack.c.l.s4 839922192
    %v429 = vunpack.c.0.s8 %v428
    %v430 = vlaneseq
    %v431 = vshrl.u32 %v430, 7
    %v432 = vsub.s32 %v429, %v431
    %v433 = vrot.slane %v425, %v432
    %435 = vset.pattern.permute.xlu0 0
    %436 = vperm.xlu0 %435, %v351
    %v437 = vpop.permute.xlu0 %436
    %v440 = vunpack.c.l.s4 839922192
    %v441 = vunpack.c.0.s8 %v440
    %v442 = vlaneseq
    %v443 = vshrl.u32 %v442, 7
    %v444 = vsub.s32 %v441, %v443
    %v445 = vrot.slane %v437, %v444
    %447 = vset.pattern.permute.xlu0 0
    %448 = vperm.xlu0 %447, %v352
    %v449 = vpop.permute.xlu0 %448
    %v452 = vunpack.c.l.s4 839922192
    %v453 = vunpack.c.0.s8 %v452
    %v454 = vlaneseq
    %v455 = vshrl.u32 %v454, 7
    %v456 = vsub.s32 %v453, %v455
    %v457 = vrot.slane %v449, %v456
    %v458 = vmul.bf16 %v354, %v373
    %v459 = vmul.bf16 %v355, %v385
    %v460 = vmul.bf16 %v356, %v397
    %v461 = vmul.bf16 %v357, %v409
    %v462 = vmul.bf16 %v358, %v421
    %v463 = vmul.bf16 %v359, %v433
    %v464 = vmul.bf16 %v360, %v445
    %v465 = vmul.bf16 %v361, %v457
    %v466 = vunpack.c.l.bf16 %v458
    %v467 = vunpack.c.l.bf16 %v459
    %v468 = vunpack.c.l.bf16 %v460
    %v469 = vunpack.c.l.bf16 %v461
    %v470 = vunpack.c.l.bf16 %v462
    %v471 = vunpack.c.l.bf16 %v463
    %v472 = vunpack.c.l.bf16 %v464
    %v473 = vunpack.c.l.bf16 %v465
    %v474 = vsel %vm179, %v466, 0.0
    %v475 = vrot.slane %v474, 4
    %v476 = vadd.f32 %v474, %v475
    %v477 = vrot.slane %v476, 2
    %v478 = vadd.f32 %v476, %v477
    %v479 = vrot.slane %v478, 1
    %v480 = vadd.f32 %v478, %v479
    %v481 = vsel %vm179, %v467, 0.0
    %v482 = vrot.slane %v481, 4
    %v483 = vadd.f32 %v481, %v482
    %v484 = vrot.slane %v483, 2
    %v485 = vadd.f32 %v483, %v484
    %v486 = vrot.slane %v485, 1
    %v487 = vadd.f32 %v485, %v486
    %v488 = vsel %vm179, %v468, 0.0
    %v489 = vrot.slane %v488, 4
    %v490 = vadd.f32 %v488, %v489
    %v491 = vrot.slane %v490, 2
    %v492 = vadd.f32 %v490, %v491
    %v493 = vrot.slane %v492, 1
    %v494 = vadd.f32 %v492, %v493
    %v495 = vsel %vm179, %v469, 0.0
    %v496 = vrot.slane %v495, 4
    %v497 = vadd.f32 %v495, %v496
    %v498 = vrot.slane %v497, 2
    %v499 = vadd.f32 %v497, %v498
    %v500 = vrot.slane %v499, 1
    %v501 = vadd.f32 %v499, %v500
    %v502 = vsel %vm179, %v470, 0.0
    %v503 = vrot.slane %v502, 4
    %v504 = vadd.f32 %v502, %v503
    %v505 = vrot.slane %v504, 2
    %v506 = vadd.f32 %v504, %v505
    %v507 = vrot.slane %v506, 1
    %v508 = vadd.f32 %v506, %v507
    %v509 = vsel %vm179, %v471, 0.0
    %v510 = vrot.slane %v509, 4
    %v511 = vadd.f32 %v509, %v510
    %v512 = vrot.slane %v511, 2
    %v513 = vadd.f32 %v511, %v512
    %v514 = vrot.slane %v513, 1
    %v515 = vadd.f32 %v513, %v514
    %v516 = vsel %vm179, %v472, 0.0
    %v517 = vrot.slane %v516, 4
    %v518 = vadd.f32 %v516, %v517
    %v519 = vrot.slane %v518, 2
    %v520 = vadd.f32 %v518, %v519
    %v521 = vrot.slane %v520, 1
    %v522 = vadd.f32 %v520, %v521
    %v523 = vsel %vm179, %v473, 0.0
    %v524 = vrot.slane %v523, 4
    %v525 = vadd.f32 %v523, %v524
    %v526 = vrot.slane %v525, 2
    %v527 = vadd.f32 %v525, %v526
    %v528 = vrot.slane %v527, 1
    %v529 = vadd.f32 %v527, %v528
    %v538 = vsel %vm244, %v487, %v480
    %v539 = vsel %vm246, %v494, %v538
    %v540 = vsel %vm248, %v501, %v539
    %v541 = vsel %vm250, %v508, %v540
    %v542 = vsel %vm252, %v515, %v541
    %v543 = vsel %vm254, %v522, %v542
    %v544 = vsel %vm256, %v529, %v543
    %v546 = vadd.f32 %v353, %v544
    %547 = vst.msk [vmem:[#allocation4] sm:$0xff] %vm179, %v546
    %v548 = vld [vmem:[#allocation5] sm:$0xff]
    %v549 = vunpack.c.l.bf16 %v345
    %v550 = vunpack.c.l.bf16 %v346
    %v551 = vunpack.c.l.bf16 %v347
    %v552 = vunpack.c.l.bf16 %v348
    %v553 = vunpack.c.l.bf16 %v349
    %v554 = vunpack.c.l.bf16 %v350
    %v555 = vunpack.c.l.bf16 %v351
    %v556 = vunpack.c.l.bf16 %v352
    %v557 = vsel %vm270, %v549, 0.0
    %v558 = vrot.slane %v557, 4
    %v559 = vadd.f32 %v557, %v558
    %v560 = vrot.slane %v559, 2
    %v561 = vadd.f32 %v559, %v560
    %v562 = vrot.slane %v561, 1
    %v563 = vadd.f32 %v561, %v562
    %v564 = vsel %vm270, %v550, 0.0
    %v565 = vrot.slane %v564, 4
    %v566 = vadd.f32 %v564, %v565
    %v567 = vrot.slane %v566, 2
    %v568 = vadd.f32 %v566, %v567
    %v569 = vrot.slane %v568, 1
    %v570 = vadd.f32 %v568, %v569
    %v571 = vsel %vm270, %v551, 0.0
    %v572 = vrot.slane %v571, 4
    %v573 = vadd.f32 %v571, %v572
    %v574 = vrot.slane %v573, 2
    %v575 = vadd.f32 %v573, %v574
    %v576 = vrot.slane %v575, 1
    %v577 = vadd.f32 %v575, %v576
    %v578 = vsel %vm270, %v552, 0.0
    %v579 = vrot.slane %v578, 4
    %v580 = vadd.f32 %v578, %v579
    %v581 = vrot.slane %v580, 2
    %v582 = vadd.f32 %v580, %v581
    %v583 = vrot.slane %v582, 1
    %v584 = vadd.f32 %v582, %v583
    %v585 = vsel %vm270, %v553, 0.0
    %v586 = vrot.slane %v585, 4
    %v587 = vadd.f32 %v585, %v586
    %v588 = vrot.slane %v587, 2
    %v589 = vadd.f32 %v587, %v588
    %v590 = vrot.slane %v589, 1
    %v591 = vadd.f32 %v589, %v590
    %v592 = vsel %vm270, %v554, 0.0
    %v593 = vrot.slane %v592, 4
    %v594 = vadd.f32 %v592, %v593
    %v595 = vrot.slane %v594, 2
    %v596 = vadd.f32 %v594, %v595
    %v597 = vrot.slane %v596, 1
    %v598 = vadd.f32 %v596, %v597
    %v599 = vsel %vm270, %v555, 0.0
    %v600 = vrot.slane %v599, 4
    %v601 = vadd.f32 %v599, %v600
    %v602 = vrot.slane %v601, 2
    %v603 = vadd.f32 %v601, %v602
    %v604 = vrot.slane %v603, 1
    %v605 = vadd.f32 %v603, %v604
    %v606 = vsel %vm270, %v556, 0.0
    %v607 = vrot.slane %v606, 4
    %v608 = vadd.f32 %v606, %v607
    %v609 = vrot.slane %v608, 2
    %v610 = vadd.f32 %v608, %v609
    %v611 = vrot.slane %v610, 1
    %v612 = vadd.f32 %v610, %v611
    %v621 = vsel %vm244, %v570, %v563
    %v622 = vsel %vm246, %v577, %v621
    %v623 = vsel %vm248, %v584, %v622
    %v624 = vsel %vm250, %v591, %v623
    %v625 = vsel %vm252, %v598, %v624
    %v626 = vsel %vm254, %v605, %v625
    %v627 = vsel %vm256, %v612, %v626
    %v629 = vadd.f32 %v548, %v627
    %630 = vst.msk [vmem:[#allocation5] sm:$0xff] %vm270, %v629
    // Predicated region
    $region50: #{tpu_custom_call.1} parent=1 // pred_check
      %p631 = pneg %p40
    $region51: #{tpu_custom_call.1} parent=1 // pred_check_branch
      %633 = sbr.rel (%p631) target = $region53
    $region52: #{tpu_custom_call.1} parent=1 // pred_region
      %v634 = vld [vmem:[#allocation2] sm:$0xff]
      %v635 = vld [vmem:[#allocation3] sm:$0xff]
      %v636 = vmax.f32 %v635, 1.0
      %638 = vset.pattern.permute.xlu0 0
      %639 = vperm.xlu0 %638, %v636
      %v640 = vpop.permute.xlu0 %639
      %v642 = vrcp.pop %v640
      %v643 = vmul.f32 %v634, %v642
      %v644 = vld [vmem:[#allocation4] sm:$0xff]
      %v645 = vld [vmem:[#allocation5] sm:$0xff]
      %v646 = vmax.f32 %v645, 1.0
      %648 = vset.pattern.permute.xlu0 0
      %649 = vperm.xlu0 %648, %v646
      %v650 = vpop.permute.xlu0 %649
      %v652 = vrcp.pop %v650
      %v653 = vmul.f32 %v644, %v652
      %v654 = vpack.c.bf16 %v643, %v643
      %v655 = vld [vmem:[%s5] sm:$0xf]
      %v656 = vld [vmem:[%s5 + $0x4] sm:$0xf]
      %v657 = vld [vmem:[%s5 + $0x8] sm:$0xf]
      %v658 = vld [vmem:[%s5 + $0xc] sm:$0xf]
      %v659 = vpack.c.bf16 %v653, %v653
      %v660 = vld [vmem:[%s6] sm:$0xf]
      %v661 = vld [vmem:[%s6 + $0x4] sm:$0xf]
      %v662 = vld [vmem:[%s6 + $0x8] sm:$0xf]
      %v663 = vld [vmem:[%s6 + $0xc] sm:$0xf]
      %v668 = vunpack.c.l.b16 %v660
      %v669 = vunpack.c.l.b16 %v661
      %v670 = vunpack.c.l.b16 %v662
      %v671 = vunpack.c.l.b16 %v663
      %v672 = vpack.c.b16 %v669, %v668
      %v673 = vpack.c.b16 %v671, %v670
      %v677 = vsel %vm179, %v659, 0
      %679 = vmatprep.subr.bf16.mxu0 0
      %680 = vmatpush1.bf16.msra.mxu0 %v672
      %681 = vmatprep.subr.bf16.mxu0 0
      %682 = vmatpush1.bf16.msra.mxu0 %v673
      %683 = vmatprep.subr.bf16.mxu0 0
      %684 = vmatpush1.bf16.msra.mxu0 0
      %685 = vmatprep.subr.bf16.mxu0 0
      %686 = vmatpush1.bf16.msra.mxu0 0
      %687 = vmatprep.subr.bf16.mxu0 0
      %688 = vmatpush1.bf16.msra.mxu0 0
      %689 = vmatprep.subr.bf16.mxu0 0
      %690 = vmatpush1.bf16.msra.mxu0 0
      %691 = vmatprep.subr.bf16.mxu0 0
      %692 = vmatpush1.bf16.msra.mxu0 0
      %693 = vmatprep.subr.bf16.mxu0 0
      %694 = vmatpush1.bf16.msra.mxu0 0
      %695 = vmatprep.subr.bf16.mxu0 0
      %696 = vmatpush1.bf16.msra.mxu0 0
      %697 = vmatprep.subr.bf16.mxu0 0
      %698 = vmatpush1.bf16.msra.mxu0 0
      %699 = vmatprep.subr.bf16.mxu0 0
      %700 = vmatpush1.bf16.msra.mxu0 0
      %701 = vmatprep.subr.bf16.mxu0 0
      %702 = vmatpush1.bf16.msra.mxu0 0
      %703 = vmatprep.subr.bf16.mxu0 0
      %704 = vmatpush1.bf16.msra.mxu0 0
      %705 = vmatprep.subr.bf16.mxu0 0
      %706 = vmatpush1.bf16.msra.mxu0 0
      %707 = vmatprep.subr.bf16.mxu0 0
      %708 = vmatpush1.bf16.msra.mxu0 0
      %709 = vmatprep.subr.bf16.mxu0 0
      %710 = vmatpush1.bf16.msra.mxu0 0
      %711 = vmatprep.mubr.bf16.mxu0 0
      %712 = vmatmul.mubr.bf16.gmra.mrb[0].mxu0 %v677
      %v713 = vpop.f32.mrb[0].mxu0
      %v714 = vadd.f32 0.0, %v713
      %v715 = vpop.f32.mrb[0].mxu0
      %v716 = vpop.f32.mrb[0].mxu0
      %v717 = vpop.f32.mrb[0].mxu0
      %718 = vdwg.mxu0
      %v723 = vunpack.c.l.b16 %v655
      %v724 = vunpack.c.l.b16 %v656
      %v725 = vunpack.c.l.b16 %v657
      %v726 = vunpack.c.l.b16 %v658
      %v727 = vpack.c.b16 %v724, %v723
      %v728 = vpack.c.b16 %v726, %v725
      %v732 = vsel %vm179, %v654, 0
      %734 = vmatprep.subr.bf16.mxu0 0
      %735 = vmatpush1.bf16.msra.mxu0 %v727
      %736 = vmatprep.subr.bf16.mxu0 0
      %737 = vmatpush1.bf16.msra.mxu0 %v728
      %738 = vmatprep.subr.bf16.mxu0 0
      %739 = vmatpush1.bf16.msra.mxu0 0
      %740 = vmatprep.subr.bf16.mxu0 0
      %741 = vmatpush1.bf16.msra.mxu0 0
      %742 = vmatprep.subr.bf16.mxu0 0
      %743 = vmatpush1.bf16.msra.mxu0 0
      %744 = vmatprep.subr.bf16.mxu0 0
      %745 = vmatpush1.bf16.msra.mxu0 0
      %746 = vmatprep.subr.bf16.mxu0 0
      %747 = vmatpush1.bf16.msra.mxu0 0
      %748 = vmatprep.subr.bf16.mxu0 0
      %749 = vmatpush1.bf16.msra.mxu0 0
      %750 = vmatprep.subr.bf16.mxu0 0
      %751 = vmatpush1.bf16.msra.mxu0 0
      %752 = vmatprep.subr.bf16.mxu0 0
      %753 = vmatpush1.bf16.msra.mxu0 0
      %754 = vmatprep.subr.bf16.mxu0 0
      %755 = vmatpush1.bf16.msra.mxu0 0
      %756 = vmatprep.subr.bf16.mxu0 0
      %757 = vmatpush1.bf16.msra.mxu0 0
      %758 = vmatprep.subr.bf16.mxu0 0
      %759 = vmatpush1.bf16.msra.mxu0 0
      %760 = vmatprep.subr.bf16.mxu0 0
      %761 = vmatpush1.bf16.msra.mxu0 0
      %762 = vmatprep.subr.bf16.mxu0 0
      %763 = vmatpush1.bf16.msra.mxu0 0
      %764 = vmatprep.subr.bf16.mxu0 0
      %765 = vmatpush1.bf16.msra.mxu0 0
      %766 = vmatprep.mubr.bf16.mxu0 0
      %767 = vmatmul.mubr.bf16.gmra.mrb[0].mxu0 %v732
      %v768 = vpop.f32.mrb[0].mxu0
      %v769 = vadd.f32 %v714, %v768
      %v770 = vpop.f32.mrb[0].mxu0
      %v771 = vpop.f32.mrb[0].mxu0
      %v772 = vpop.f32.mrb[0].mxu0
      %773 = vdwg.mxu0
      %v774 = vld [vmem:[%s4] sm:$0xff]
      %v775 = vld [vmem:[%s8] sm:$0x1]
      %777 = vset.pattern.permute.xlu0 0
      %778 = vperm.xlu0 %777, %v774
      %v779 = vpop.permute.xlu0 %778
      %v782 = vlaneseq
      %v783 = vshrl.u32 %v782, 7
      %v784 = vsub.s32 0, %v783
      %v785 = vrot.slane %v775, %v784
      %v787 = vmul.f32 %v779, %v785
      %v788 = vadd.f32 %v769, %v787
      %v789 = vld [vmem:[%s7] sm:$0x1]
      %v791 = vlaneseq
      %v792 = vshrl.u32 %v791, 7
      %v793 = vsub.s32 0, %v792
      %v794 = vrot.slane %v789, %v793
      %v796 = vadd.f32 %v788, %v794
      %v797 = vmax.f32 %v796, 0.0
      %v798 = vpack.c.bf16 %v797, %v797
      %v799 = vld [vmem:[%s9] sm:$0xf]
      %v800 = vld [vmem:[%s9 + $0x4] sm:$0xf]
      %v801 = vld [vmem:[%s9 + $0x8] sm:$0xf]
      %v802 = vld [vmem:[%s9 + $0xc] sm:$0xf]
      %v803 = vld [vmem:[%s10] sm:$0x1]
      %v805 = vlaneseq
      %v806 = vshrl.u32 %v805, 7
      %v807 = vsub.s32 0, %v806
      %v808 = vrot.slane %v803, %v807
      %v814 = vunpack.c.l.b16 %v799
      %v815 = vunpack.c.l.b16 %v800
      %v816 = vunpack.c.l.b16 %v801
      %v817 = vunpack.c.l.b16 %v802
      %v818 = vpack.c.b16 %v815, %v814
      %v819 = vpack.c.b16 %v817, %v816
      %v823 = vsel %vm179, %v798, 0
      %825 = vmatprep.subr.bf16.mxu0 0
      %826 = vmatpush1.bf16.msra.mxu0 %v818
      %827 = vmatprep.subr.bf16.mxu0 0
      %828 = vmatpush1.bf16.msra.mxu0 %v819
      %829 = vmatprep.subr.bf16.mxu0 0
      %830 = vmatpush1.bf16.msra.mxu0 0
      %831 = vmatprep.subr.bf16.mxu0 0
      %832 = vmatpush1.bf16.msra.mxu0 0
      %833 = vmatprep.subr.bf16.mxu0 0
      %834 = vmatpush1.bf16.msra.mxu0 0
      %835 = vmatprep.subr.bf16.mxu0 0
      %836 = vmatpush1.bf16.msra.mxu0 0
      %837 = vmatprep.subr.bf16.mxu0 0
      %838 = vmatpush1.bf16.msra.mxu0 0
      %839 = vmatprep.subr.bf16.mxu0 0
      %840 = vmatpush1.bf16.msra.mxu0 0
      %841 = vmatprep.subr.bf16.mxu0 0
      %842 = vmatpush1.bf16.msra.mxu0 0
      %843 = vmatprep.subr.bf16.mxu0 0
      %844 = vmatpush1.bf16.msra.mxu0 0
      %845 = vmatprep.subr.bf16.mxu0 0
      %846 = vmatpush1.bf16.msra.mxu0 0
      %847 = vmatprep.subr.bf16.mxu0 0
      %848 = vmatpush1.bf16.msra.mxu0 0
      %849 = vmatprep.subr.bf16.mxu0 0
      %850 = vmatpush1.bf16.msra.mxu0 0
      %851 = vmatprep.subr.bf16.mxu0 0
      %852 = vmatpush1.bf16.msra.mxu0 0
      %853 = vmatprep.subr.bf16.mxu0 0
      %854 = vmatpush1.bf16.msra.mxu0 0
      %855 = vmatprep.subr.bf16.mxu0 0
      %856 = vmatpush1.bf16.msra.mxu0 0
      %857 = vmatprep.mubr.bf16.mxu0 0
      %858 = vmatmul.mubr.bf16.gmra.mrb[0].mxu0 %v823
      %v859 = vpop.f32.mrb[0].mxu0
      %v860 = vadd.f32 %v808, %v859
      %v861 = vpop.f32.mrb[0].mxu0
      %v862 = vpop.f32.mrb[0].mxu0
      %v863 = vpop.f32.mrb[0].mxu0
      %864 = vdwg.mxu0
      %865 = vmax.xlane.f32.xlu0 %v860
      %v866 = vpop.xlane.xlu0 %865
      %v867 = vsub.f32 %v860, %v866
      %v868 = vmul.f32 %v867, 1.442695
      %v869 = vpow.pop %v868
      %870 = vadd.xlane.f32.xlu0 %v869
      %v871 = vpop.xlane.xlu0 %870
      %v872 = vrcp.pop %v871
      %v873 = vmul.f32 %v869, %v872
      %874 = vst [vmem:[#allocation6] sm:$0xff] %v873
    $region53: #{tpu_custom_call.1} parent=1 // pred_fallthru
      _
    // Predicated region
    $region54: #{tpu_custom_call.1} parent=1 // pred_check
      _
    $region55: #{tpu_custom_call.1} parent=1 // pred_check_branch
      %876 = sbr.rel (0) target = $region57
    $region56: #{tpu_custom_call.1} parent=1 // pred_region
      %s878 = ssub.s32 128, 128
      %879 = vsyncadd [#allocation7], %s878
      %s881 = sshll.u32 [#allocation6], 4
      %s882 = int_to_ptr.vmem [resolvable:$true] %s881
      %884 = dma.vmem_to_hbm [thread:$0]  %s882, 128, %s11, [#allocation7]
    $region57: #{tpu_custom_call.1} parent=1 // pred_fallthru
      _
    // Predicated region
    $region58: #{tpu_custom_call.1} parent=1 // pred_check
      _
    $region59: #{tpu_custom_call.1} parent=1 // pred_check_branch
      %886 = sbr.rel (0) target = $region61
    $region60: #{tpu_custom_call.1} parent=1 // pred_region
      %887 = dma.done [#allocation7], 128
    $region61: #{tpu_custom_call.1} parent=1 // pred_fallthru
      _
    %888 = vsyncpa [#allocation7], 1

</llo_original>
